<compile_context>
chip_gen: v7x
topology: tpu7x:2x2x1
jax: 0.10.0
libtpu: 0.0.40
codegen_flags: <defaults>
</compile_context>

<pallas_src>
import math

import jax
import jax.numpy as jnp
from jax import lax
from jax.experimental import pallas as pl
from jax.experimental.pallas import tpu as pltpu

INV_SQRT2 = 1.0 / math.sqrt(2.0)


def conv_gelu_adain_kernel(a_ref, w_ref, b_ref, scale_ref, bias_ref, mavg_ref, o_ref):
    """Fused Conv1d + GELU + channel instance-norm + AdaIN affine on one
    (batch, time-tile) block; everything kept 128-lane dense.

    a_ref:     (1, TT, KC)  im2col'd input: row r packs the (P+K-1) padded time rows
                            needed for output time steps P*r .. P*r+P-1.
    w_ref:     (KC, PC)     block-Toeplitz conv weight (single MXU matmul).
    b_ref:     (1, PC)      conv bias, tiled P times along lanes.
    scale_ref: (1, 1, PC)   per-batch AdaIN scale, tiled P times along lanes.
    bias_ref:  (1, 1, PC)   per-batch AdaIN bias, tiled P times along lanes.
    mavg_ref:  (PC, PC)     block-diagonal averaging matrix (1/C_out within each
                            C_out-lane group) so the per-timestep channel mean is
                            an MXU matmul instead of an XLU/VPU reduction.
    o_ref:     (1, TT, PC)  packed output (P time steps per 128-lane row).
    """
    a = a_ref[0]                                                    # (TT, KC)

    # --- Conv1d (replicate padding + all K taps folded into one matmul) ---
    conv = jnp.dot(a, w_ref[...], preferred_element_type=jnp.float32)
    conv = conv + b_ref[...]                                        # (TT, PC)

    # --- exact GELU (matches F.gelu approximate='none') ---
    g = 0.5 * conv * (1.0 + lax.erf(conv * INV_SQRT2))

    # --- InstanceNorm over each packed time step's channel group:
    #     segmented lane mean via MXU matmul, one-pass variance ---
    mavg = mavg_ref[...]
    mean = jnp.dot(g, mavg, preferred_element_type=jnp.float32)
    ex2 = jnp.dot(g * g, mavg, preferred_element_type=jnp.float32)
    var = jnp.maximum(ex2 - mean * mean, 0.0)
    gn = (g - mean) * lax.rsqrt(var + 1e-5)

    # --- AdaIN affine (scale/bias precomputed in the wrapper, per batch) ---
    o_ref[0] = gn * scale_ref[0] + bias_ref[0]


def conv_adain_forward(x, cond, conv_w, conv_b, lin_w, *, kernel_size):
    """x: (B, T, C_in); cond: (B, 1, d_cond) or (B, d_cond).
    conv_w: (C_out, C_in, K) torch layout; conv_b: (C_out,);
    lin_w: (2*C_out, d_cond) torch layout. Returns (B, T, C_out) float32."""
    B, T, c_in = x.shape
    c_out, _, K = conv_w.shape
    assert K == kernel_size and K % 2 == 1, "odd kernel_size => same-length output"
    pad = (K - 1) // 2

    # Lane packing: put P consecutive time steps on one 128-lane output row.
    P = 128 // c_out if (c_out <= 128 and 128 % c_out == 0) else 1
    PC = P * c_out                        # packed lane width (128 when possible)
    KC = (P + K - 1) * c_in               # fused im2col contraction depth

    R = -(-T // P)                        # packed rows needed to cover T
    TT = R if R <= 256 else 256           # time tile (packed rows); VMEM-safe on v7x
    R_pad = -(-R // TT) * TT
    n_t = R_pad // TT

    # ---- glue (XLA): replicate pad, im2col, parameter re-layout ----
    x32 = x.astype(jnp.float32)
    x_pad = jnp.pad(x32, ((0, 0), (pad, pad), (0, 0)), mode="edge")  # (B, T+K-1, C_in)
    t_need = R_pad * P + (K - 1)
    extra = t_need - x_pad.shape[1]
    if extra > 0:                          # pad T up to a tile multiple (rows dropped later)
        x_pad = jnp.pad(x_pad, ((0, 0), (0, extra), (0, 0)), mode="edge")

    # A[b, r, qp*c_in + ci] = x_pad[b, P*r + qp, ci]
    cols = [
        lax.slice(x_pad, (0, qp, 0), (B, qp + (R_pad - 1) * P + 1, c_in), (1, P, 1))
        for qp in range(P + K - 1)
    ]
    a_im2col = jnp.concatenate(cols, axis=-1)                        # (B, R_pad, KC)

    # Block-Toeplitz weight: one matmul yields all P packed time steps.
    w_taps = jnp.transpose(conv_w, (2, 1, 0)).astype(jnp.float32)    # (K, C_in, C_out)
    w_big = jnp.zeros((KC, PC), jnp.float32)
    for q in range(P):
        for j in range(K):
            qp = q + j
            w_big = w_big.at[qp * c_in:(qp + 1) * c_in,
                             q * c_out:(q + 1) * c_out].set(w_taps[j])

    b_tiled = jnp.tile(conv_b.astype(jnp.float32), P).reshape(1, PC)

    # AdaIN linear hoisted out of the kernel: one batched XLA matmul for all B.
    sb = cond.astype(jnp.float32).reshape(B, -1) @ lin_w.astype(jnp.float32).T
    scale = jnp.tile(sb[:, :c_out], (1, P)).reshape(B, 1, PC)
    bias = jnp.tile(sb[:, c_out:], (1, P)).reshape(B, 1, PC)

    # Block-diagonal averaging matrix (segmented channel mean as an MXU matmul).
    lane = jnp.arange(PC)
    m_avg = jnp.where((lane[:, None] // c_out) == (lane[None, :] // c_out),
                      jnp.float32(1.0 / c_out), jnp.float32(0.0))

    out_packed = pl.pallas_call(
        conv_gelu_adain_kernel,
        out_shape=jax.ShapeDtypeStruct((B, R_pad, PC), jnp.float32),
        grid=(B, n_t),
        in_specs=[
            pl.BlockSpec((1, TT, KC), lambda b, t: (b, t, 0)),
            pl.BlockSpec((KC, PC), lambda b, t: (0, 0)),
            pl.BlockSpec((1, PC), lambda b, t: (0, 0)),
            pl.BlockSpec((1, 1, PC), lambda b, t: (b, 0, 0)),
            pl.BlockSpec((1, 1, PC), lambda b, t: (b, 0, 0)),
            pl.BlockSpec((PC, PC), lambda b, t: (0, 0)),
        ],
        out_specs=pl.BlockSpec((1, TT, PC), lambda b, t: (b, t, 0)),
        compiler_params=pltpu.CompilerParams(
            dimension_semantics=("parallel", "parallel"),
            vmem_limit_bytes=32 * 1024 * 1024),
    )(a_im2col, w_big, b_tiled, scale, bias, m_avg)

    # Free row-major unpack: (B, R_pad, P*C_out) -> (B, R_pad*P, C_out), drop pad rows.
    return out_packed.reshape(B, R_pad * P, c_out)[:, :T, :]


def reference_forward(x, cond, conv_w, conv_b, lin_w, *, kernel_size):
    """Pure-JAX reference with the module's exact math, for sanity checking."""
    B, T, c_in = x.shape
    c_out, _, K = conv_w.shape
    pad = (kernel_size - 1) // 2
    x_pad = jnp.pad(x, ((0, 0), (pad, pad), (0, 0)), mode="edge")
    w_taps = jnp.transpose(conv_w, (2, 1, 0))  # (K, C_in, C_out)
    out = jnp.broadcast_to(conv_b[None, None, :], (B, T, c_out)).astype(jnp.float32)
    for j in range(K):
        out = out + jnp.einsum("btc,cd->btd", x_pad[:, j:j + T, :], w_taps[j])
    g = 0.5 * out * (1.0 + lax.erf(out * INV_SQRT2))
    mean = jnp.mean(g, axis=-1, keepdims=True)
    var = jnp.mean((g - mean) ** 2, axis=-1, keepdims=True)
    gn = (g - mean) / jnp.sqrt(var + 1e-5)
    sb = jnp.einsum("bqc,dc->bqd", cond, lin_w)  # (B, 1, 2*C_out)
    s, b = sb[..., :c_out], sb[..., c_out:]
    return gn * s + b


if __name__ == "__main__":
    # Module hyperparameters: Conv(d_in=4, d_out=32, kernel_size=3, d_cond=8,
    #                              use_norm=True, stride=1, bias=True, dropout=0.0)
    B, T, d_in, d_out, K, d_cond = 2, 16, 4, 32, 3, 8

    key = jax.random.PRNGKey(0)
    kx, kc, kw, kb, kl = jax.random.split(key, 5)

    x = jax.random.normal(kx, (B, T, d_in), dtype=jnp.float32)
    cond = jax.random.normal(kc, (B, 1, d_cond), dtype=jnp.float32)

    # Deterministic synthetic parameters (torch shapes: Conv1d / Linear).
    conv_w = 0.1 * jax.random.normal(kw, (d_out, d_in, K), dtype=jnp.float32)
    conv_b = 0.1 * jax.random.normal(kb, (d_out,), dtype=jnp.float32)
    lin_w = 0.1 * jax.random.normal(kl, (2 * d_out, d_cond), dtype=jnp.float32)

    out = conv_adain_forward(x, cond, conv_w, conv_b, lin_w, kernel_size=K)
    out = jax.block_until_ready(out)

    ref = reference_forward(x, cond, conv_w, conv_b, lin_w, kernel_size=K)
    assert out.shape == (B, T, d_out)
    assert jnp.allclose(out, ref, atol=2e-4, rtol=2e-4)

    print("KERNEL_OK")
</pallas_src>

<mosaic_0001>
module attributes {stable_mosaic.version = 11 : i64} {
  func.func @conv_gelu_adain_kernel(%arg0: i32, %arg1: i32, %arg2: memref<1x4x24xf32, #tpu.memory_space<vmem>>, %arg3: memref<24x128xf32, #tpu.memory_space<vmem>>, %arg4: memref<1x128xf32, #tpu.memory_space<vmem>>, %arg5: memref<1x1x128xf32, #tpu.memory_space<vmem>>, %arg6: memref<1x1x128xf32, #tpu.memory_space<vmem>>, %arg7: memref<128x128xf32, #tpu.memory_space<vmem>>, %arg8: memref<1x4x128xf32, #tpu.memory_space<vmem>>) attributes {dimension_semantics = [#tpu.dimension_semantics<parallel>, #tpu.dimension_semantics<parallel>], iteration_bounds = array<i64: 2, 1>, scalar_prefetch = 0 : i64, scratch_operands = 0 : i64, tpu.core_type = #tpu.core_type<tc>, window_params = [{transform_indices = @transform_0, window_bounds = array<i64: 1, 4, 24>}, {pipeline_mode = #tpu.pipeline_mode<synchronous>, transform_indices = @transform_1, window_bounds = array<i64: 24, 128>}, {pipeline_mode = #tpu.pipeline_mode<synchronous>, transform_indices = @transform_2, window_bounds = array<i64: 1, 128>}, {transform_indices = @transform_3, window_bounds = array<i64: 1, 1, 128>}, {transform_indices = @transform_4, window_bounds = array<i64: 1, 1, 128>}, {pipeline_mode = #tpu.pipeline_mode<synchronous>, transform_indices = @transform_5, window_bounds = array<i64: 128, 128>}, {transform_indices = @transform_6, window_bounds = array<i64: 1, 4, 128>}]} {
    %c0 = arith.constant 0 : index
    %c0_0 = arith.constant 0 : index
    %c0_1 = arith.constant 0 : index
    %0 = vector.load %arg2[%c0, %c0_0, %c0_1] : memref<1x4x24xf32, #tpu.memory_space<vmem>>, vector<1x4x24xf32>
    %1 = vector.shape_cast %0 : vector<1x4x24xf32> to vector<4x24xf32>
    %c0_2 = arith.constant 0 : index
    %c0_3 = arith.constant 0 : index
    %2 = vector.load %arg3[%c0_2, %c0_3] : memref<24x128xf32, #tpu.memory_space<vmem>>, vector<24x128xf32>
    %cst = arith.constant dense<0.000000e+00> : vector<4x128xf32>
    %3 = tpu.matmul %1, %2, %cst {dimension_numbers = #tpu.dot_dimension_numbers<[1], [0], [0], [1], [0, 0, 1, 1], [], []>} : vector<4x24xf32>, vector<24x128xf32>, vector<4x128xf32> -> vector<4x128xf32>
    %c0_4 = arith.constant 0 : index
    %c0_5 = arith.constant 0 : index
    %4 = vector.load %arg4[%c0_4, %c0_5] : memref<1x128xf32, #tpu.memory_space<vmem>>, vector<1x128xf32>
    %5 = vector.broadcast %4 : vector<1x128xf32> to vector<4x128xf32>
    %6 = arith.addf %3, %5 : vector<4x128xf32>
    %cst_6 = arith.constant 5.000000e-01 : f32
    %7 = vector.broadcast %cst_6 : f32 to vector<4x128xf32>
    %8 = arith.mulf %7, %6 : vector<4x128xf32>
    %cst_7 = arith.constant 0.707106769 : f32
    %9 = vector.broadcast %cst_7 : f32 to vector<4x128xf32>
    %10 = arith.mulf %6, %9 : vector<4x128xf32>
    %11 = math.erf %10 : vector<4x128xf32>
    %cst_8 = arith.constant 1.000000e+00 : f32
    %12 = vector.broadcast %cst_8 : f32 to vector<4x128xf32>
    %13 = arith.addf %12, %11 : vector<4x128xf32>
    %14 = arith.mulf %8, %13 : vector<4x128xf32>
    %c0_9 = arith.constant 0 : index
    %c0_10 = arith.constant 0 : index
    %15 = vector.load %arg7[%c0_9, %c0_10] : memref<128x128xf32, #tpu.memory_space<vmem>>, vector<128x128xf32>
    %cst_11 = arith.constant dense<0.000000e+00> : vector<4x128xf32>
    %16 = tpu.matmul %14, %15, %cst_11 {dimension_numbers = #tpu.dot_dimension_numbers<[1], [0], [0], [1], [0, 0, 1, 1], [], []>} : vector<4x128xf32>, vector<128x128xf32>, vector<4x128xf32> -> vector<4x128xf32>
    %17 = arith.mulf %14, %14 : vector<4x128xf32>
    %cst_12 = arith.constant dense<0.000000e+00> : vector<4x128xf32>
    %18 = tpu.matmul %17, %15, %cst_12 {dimension_numbers = #tpu.dot_dimension_numbers<[1], [0], [0], [1], [0, 0, 1, 1], [], []>} : vector<4x128xf32>, vector<128x128xf32>, vector<4x128xf32> -> vector<4x128xf32>
    %19 = arith.mulf %16, %16 : vector<4x128xf32>
    %20 = arith.subf %18, %19 : vector<4x128xf32>
    %cst_13 = arith.constant 0.000000e+00 : f32
    %21 = vector.broadcast %cst_13 : f32 to vector<4x128xf32>
    %22 = arith.maximumf %20, %21 : vector<4x128xf32>
    %23 = arith.subf %14, %16 : vector<4x128xf32>
    %cst_14 = arith.constant 9.99999974E-6 : f32
    %24 = vector.broadcast %cst_14 : f32 to vector<4x128xf32>
    %25 = arith.addf %22, %24 : vector<4x128xf32>
    %26 = math.rsqrt %25 : vector<4x128xf32>
    %27 = arith.mulf %23, %26 : vector<4x128xf32>
    %c0_15 = arith.constant 0 : index
    %c0_16 = arith.constant 0 : index
    %c0_17 = arith.constant 0 : index
    %28 = vector.load %arg5[%c0_15, %c0_16, %c0_17] : memref<1x1x128xf32, #tpu.memory_space<vmem>>, vector<1x1x128xf32>
    %29 = vector.shape_cast %28 : vector<1x1x128xf32> to vector<1x128xf32>
    %30 = vector.broadcast %29 : vector<1x128xf32> to vector<4x128xf32>
    %31 = arith.mulf %27, %30 : vector<4x128xf32>
    %c0_18 = arith.constant 0 : index
    %c0_19 = arith.constant 0 : index
    %c0_20 = arith.constant 0 : index
    %32 = vector.load %arg6[%c0_18, %c0_19, %c0_20] : memref<1x1x128xf32, #tpu.memory_space<vmem>>, vector<1x1x128xf32>
    %33 = vector.shape_cast %32 : vector<1x1x128xf32> to vector<1x128xf32>
    %34 = vector.broadcast %33 : vector<1x128xf32> to vector<4x128xf32>
    %35 = arith.addf %31, %34 : vector<4x128xf32>
    %c0_21 = arith.constant 0 : index
    %c0_22 = arith.constant 0 : index
    %c0_23 = arith.constant 0 : index
    %36 = vector.load %arg8[%c0_21, %c0_22, %c0_23] : memref<1x4x128xf32, #tpu.memory_space<vmem>>, vector<1x4x128xf32>
    %37 = vector.shape_cast %36 : vector<1x4x128xf32> to vector<4x128xf32>
    %38 = vector.shape_cast %35 : vector<4x128xf32> to vector<1x4x128xf32>
    tpu.vector_store %arg8[%c0_21, %c0_22, %c0_23], %38 {strides = array<i32>} : memref<1x4x128xf32, #tpu.memory_space<vmem>>, vector<1x4x128xf32>,
    return
  }
  func.func @transform_0(%arg0: i32, %arg1: i32) -> (i32, i32, i32) {
    %c0_i32 = arith.constant 0 : i32
    %c0_i32_0 = arith.constant 0 : i32
    return %arg0, %arg1, %c0_i32 : i32, i32, i32
  }
  func.func @transform_1(%arg0: i32, %arg1: i32) -> (i32, i32) {
    %c0_i32 = arith.constant 0 : i32
    %c0_i32_0 = arith.constant 0 : i32
    %c0_i32_1 = arith.constant 0 : i32
    return %c0_i32, %c0_i32_0 : i32, i32
  }
  func.func @transform_2(%arg0: i32, %arg1: i32) -> (i32, i32) {
    %c0_i32 = arith.constant 0 : i32
    %c0_i32_0 = arith.constant 0 : i32
    %c0_i32_1 = arith.constant 0 : i32
    return %c0_i32, %c0_i32_0 : i32, i32
  }
  func.func @transform_3(%arg0: i32, %arg1: i32) -> (i32, i32, i32) {
    %c0_i32 = arith.constant 0 : i32
    %c0_i32_0 = arith.constant 0 : i32
    %c0_i32_1 = arith.constant 0 : i32
    return %arg0, %c0_i32, %c0_i32_0 : i32, i32, i32
  }
  func.func @transform_4(%arg0: i32, %arg1: i32) -> (i32, i32, i32) {
    %c0_i32 = arith.constant 0 : i32
    %c0_i32_0 = arith.constant 0 : i32
    %c0_i32_1 = arith.constant 0 : i32
    return %arg0, %c0_i32, %c0_i32_0 : i32, i32, i32
  }
  func.func @transform_5(%arg0: i32, %arg1: i32) -> (i32, i32) {
    %c0_i32 = arith.constant 0 : i32
    %c0_i32_0 = arith.constant 0 : i32
    %c0_i32_1 = arith.constant 0 : i32
    return %c0_i32, %c0_i32_0 : i32, i32
  }
  func.func @transform_6(%arg0: i32, %arg1: i32) -> (i32, i32, i32) {
    %c0_i32 = arith.constant 0 : i32
    %c0_i32_0 = arith.constant 0 : i32
    return %arg0, %arg1, %c0_i32 : i32, i32, i32
  }
}

</mosaic_0001>

<llo_original>
// kernel: tpu_custom_call.1
$region0: #{tpu_custom_call.1}
  #allocation0 [shape = 'u32[]', space=smem, size = 0x4, offset = 0x4, fixed_abs, tag = 'smem constant byte address 0x4 - core index']
  #allocation1 [shape = 'u32[144,128]{1,0:T(1,128)}', space=vmem, size = 0x12000, scoped, tag = 'internal scratch']
  %s0 = inlined_call_operand.hbm [shape: f32[2,4,24], index: 0, kind: input, shape index: {}]
  %s1 = inlined_call_operand.hbm [shape: f32[24,128], index: 1, kind: input, shape index: {}]
  %s2 = inlined_call_operand.vmem [shape: f32[1,128], index: 2, kind: input, shape index: {}]
  %s3 = inlined_call_operand.vmem [shape: f32[2,1,128], index: 3, kind: input, shape index: {}]
  %s4 = inlined_call_operand.vmem [shape: f32[2,1,128], index: 4, kind: input, shape index: {}]
  %s5 = inlined_call_operand.hbm [shape: f32[128,128], index: 5, kind: input, shape index: {}]
  %s6 = inlined_call_operand.hbm [shape: f32[2,4,128], index: 6, kind: output, shape index: {}]
  %s7 = sld [smem:[#allocation0]]
  $region69: #{tpu_custom_call.1} parent=0
    _
  %s9 = ssub.s32 1, %s7
  %s10 = scalar_select 0, %s9, %s7
  $region1: #{tpu_custom_call.1} parent=0
    #allocation2 [shape = 'u8[4096]{0}', space=vmem, size = 0x1000, scoped, tag = 'input window, operand 0']
    #allocation3 [shape = 's32[2]{0}', space=sflag, size = 0x8, scoped, tag = 'scoped memory for tpu_custom_call.1']
    #allocation4 [shape = 's32[2]{0}', space=sflag, size = 0x8, scoped, tag = 'scoped memory for tpu_custom_call.1']
    #allocation5 [shape = 'u8[12288]{0}', space=vmem, size = 0x3000, scoped, tag = 'input window, operand 1, single buffered']
    #allocation6 [shape = 's32[1]{0}', space=sflag, size = 0x4, scoped, tag = 'scoped memory for tpu_custom_call.1']
    #allocation7 [shape = 'u8[65536]{0}', space=vmem, size = 0x10000, scoped, tag = 'input window, operand 5, single buffered']
    #allocation8 [shape = 'u8[4096]{0}', space=vmem, size = 0x1000, scoped, tag = 'output window, operand 0']
    %11 = vsyncpa [#allocation3], 0
    %s12 = scalar_lea.sflag [#allocation3], 1
    %13 = vsyncpa %s12, 0
    %14 = vsyncpa [#allocation6], 0
    %15 = vsyncpa [#allocation4], 0
    %s16 = scalar_lea.sflag [#allocation4], 1
    %17 = vsyncpa %s16, 0
    loop: start=0, step=1, limit=4
    $region2: #{tpu_custom_call.1} parent=1 // loop_pre_header
      _
    $region3: #{tpu_custom_call.1} parent=1 // loop_header
      %s19 = sphi 0, %s23
      %p20 = scmp.ge.s32.totalorder %s19, 4
      %s26 = sphi 0, %s38
      %s27 = sphi 0, %s34
      %s28 = sphi 0, %s26
      %s29 = sphi 0, %s27
      %s30 = sphi 0, %s28
      %s31 = sphi 0, %s29
      %s43 = sphi 0, %s45
      %s46 = sphi 0, %s43
      %s47 = sphi 0, %s46
      %s63 = sphi 0, %s47
      %s67 = sphi 0, %s67
      %s69 = sphi 0, %s67
      %s70 = sphi 0, %s69
      %s84 = sphi 0, %s70
      %s88 = sphi 0, %s88
      %s90 = sphi 0, %s88
      %s91 = sphi 0, %s90
      %s105 = sphi 0, %s91
      %s111 = sphi 0, %s113
      %s114 = sphi 0, %s111
      %s115 = sphi 0, %s114
      %s131 = sphi 0, %s115
      %s137 = sphi 0, %s139
      %s140 = sphi 0, %s137
      %s141 = sphi 0, %s140
      %s157 = sphi 0, %s141
      %s161 = sphi 0, %s161
      %s163 = sphi 0, %s161
      %s164 = sphi 0, %s163
      %s178 = sphi 0, %s164
      %s186 = sphi 0, %s188
      %s189 = sphi 0, %s186
      %s190 = sphi 0, %s189
      %s206 = sphi 0, %s190
    $region4: #{tpu_custom_call.1} parent=1 // loop_header_branch
      %22 = sbr.rel (%p20) target = $region8
    $region5: #{tpu_custom_call.1} parent=1 // loop_body
      %s24 = ssub.s32 %s19, 1
      %s25 = ssub.s32 %s19, 2
      %s32 = sadd.s32 1, %s27
      %p33 = scmp.ge.s32.totalorder %s32, 1
      %s34 = scalar_select %p33, 0, %s32
      %s35 = sadd.s32 1, %s26
      %s36 = scalar_select %p33, %s35, %s26
      %p37 = scmp.ge.s32.totalorder %s36, 2
      %s38 = scalar_select %p37, 0, %s36
      %s39 = ssub.s32 %s26, %s38
      %s40 = ssub.s32 %s27, %s34
      %s41 = sor.u32 %s39, %s40
      %p42 = scmp.eq.s32.totalorder %s41, 0
      %s44 = sadd.s32 %s43, 1
      %s45 = scalar_select %p42, %s43, %s44
      %p48 = pneg %p42
      %p49 = scmp.eq.s32.totalorder %s19, 1
      %p50 = por %p48, %p49
      %p51 = scmp.ne.s32.totalorder %s43, %s46
      %p52 = scmp.eq.s32.totalorder %s19, 0
      %p53 = por %p51, %p52
      %p54 = scmp.ne.s32.totalorder %s43, %s46
      %p55 = scmp.eq.s32.totalorder %s24, 1
      %p56 = por %p54, %p55
      %p57 = scmp.ne.s32.totalorder %s46, %s47
      %p58 = scmp.eq.s32.totalorder %s24, 0
      %p59 = por %p57, %p58
      %p60 = scmp.ne.s32.totalorder %s46, %s47
      %p61 = scmp.eq.s32.totalorder %s25, 1
      %p62 = por %p60, %p61
      %p64 = scmp.ne.s32.totalorder %s47, %s63
      %p65 = scmp.eq.s32.totalorder %s25, 0
      %p66 = por %p64, %p65
      %s68 = sadd.s32 %s67, 1
      %p71 = scmp.eq.s32.totalorder %s19, 1
      %p72 = scmp.ne.s32.totalorder %s67, %s69
      %p73 = scmp.eq.s32.totalorder %s19, 0
      %p74 = por %p72, %p73
      %p75 = scmp.ne.s32.totalorder %s67, %s69
      %p76 = scmp.eq.s32.totalorder %s24, 1
      %p77 = por %p75, %p76
      %p78 = scmp.ne.s32.totalorder %s69, %s70
      %p79 = scmp.eq.s32.totalorder %s24, 0
      %p80 = por %p78, %p79
      %p81 = scmp.ne.s32.totalorder %s69, %s70
      %p82 = scmp.eq.s32.totalorder %s25, 1
      %p83 = por %p81, %p82
      %p85 = scmp.ne.s32.totalorder %s70, %s84
      %p86 = scmp.eq.s32.totalorder %s25, 0
      %p87 = por %p85, %p86
      %s89 = sadd.s32 %s88, 1
      %p92 = scmp.eq.s32.totalorder %s19, 1
      %p93 = scmp.ne.s32.totalorder %s88, %s90
      %p94 = scmp.eq.s32.totalorder %s19, 0
      %p95 = por %p93, %p94
      %p96 = scmp.ne.s32.totalorder %s88, %s90
      %p97 = scmp.eq.s32.totalorder %s24, 1
      %p98 = por %p96, %p97
      %p99 = scmp.ne.s32.totalorder %s90, %s91
      %p100 = scmp.eq.s32.totalorder %s24, 0
      %p101 = por %p99, %p100
      %p102 = scmp.ne.s32.totalorder %s90, %s91
      %p103 = scmp.eq.s32.totalorder %s25, 1
      %p104 = por %p102, %p103
      %p106 = scmp.ne.s32.totalorder %s91, %s105
      %p107 = scmp.eq.s32.totalorder %s25, 0
      %p108 = por %p106, %p107
      %s109 = ssub.s32 %s26, %s38
      %p110 = scmp.eq.s32.totalorder %s109, 0
      %s112 = sadd.s32 %s111, 1
      %s113 = scalar_select %p110, %s111, %s112
      %p116 = pneg %p110
      %p117 = scmp.eq.s32.totalorder %s19, 1
      %p118 = por %p116, %p117
      %p119 = scmp.ne.s32.totalorder %s111, %s114
      %p120 = scmp.eq.s32.totalorder %s19, 0
      %p121 = por %p119, %p120
      %p122 = scmp.ne.s32.totalorder %s111, %s114
      %p123 = scmp.eq.s32.totalorder %s24, 1
      %p124 = por %p122, %p123
      %p125 = scmp.ne.s32.totalorder %s114, %s115
      %p126 = scmp.eq.s32.totalorder %s24, 0
      %p127 = por %p125, %p126
      %p128 = scmp.ne.s32.totalorder %s114, %s115
      %p129 = scmp.eq.s32.totalorder %s25, 1
      %p130 = por %p128, %p129
      %p132 = scmp.ne.s32.totalorder %s115, %s131
      %p133 = scmp.eq.s32.totalorder %s25, 0
      %p134 = por %p132, %p133
      %s135 = ssub.s32 %s26, %s38
      %p136 = scmp.eq.s32.totalorder %s135, 0
      %s138 = sadd.s32 %s137, 1
      %s139 = scalar_select %p136, %s137, %s138
      %p142 = pneg %p136
      %p143 = scmp.eq.s32.totalorder %s19, 1
      %p144 = por %p142, %p143
      %p145 = scmp.ne.s32.totalorder %s137, %s140
      %p146 = scmp.eq.s32.totalorder %s19, 0
      %p147 = por %p145, %p146
      %p148 = scmp.ne.s32.totalorder %s137, %s140
      %p149 = scmp.eq.s32.totalorder %s24, 1
      %p150 = por %p148, %p149
      %p151 = scmp.ne.s32.totalorder %s140, %s141
      %p152 = scmp.eq.s32.totalorder %s24, 0
      %p153 = por %p151, %p152
      %p154 = scmp.ne.s32.totalorder %s140, %s141
      %p155 = scmp.eq.s32.totalorder %s25, 1
      %p156 = por %p154, %p155
      %p158 = scmp.ne.s32.totalorder %s141, %s157
      %p159 = scmp.eq.s32.totalorder %s25, 0
      %p160 = por %p158, %p159
      %s162 = sadd.s32 %s161, 1
      %p165 = scmp.eq.s32.totalorder %s19, 1
      %p166 = scmp.ne.s32.totalorder %s161, %s163
      %p167 = scmp.eq.s32.totalorder %s19, 0
      %p168 = por %p166, %p167
      %p169 = scmp.ne.s32.totalorder %s161, %s163
      %p170 = scmp.eq.s32.totalorder %s24, 1
      %p171 = por %p169, %p170
      %p172 = scmp.ne.s32.totalorder %s163, %s164
      %p173 = scmp.eq.s32.totalorder %s24, 0
      %p174 = por %p172, %p173
      %p175 = scmp.ne.s32.totalorder %s163, %s164
      %p176 = scmp.eq.s32.totalorder %s25, 1
      %p177 = por %p175, %p176
      %p179 = scmp.ne.s32.totalorder %s164, %s178
      %p180 = scmp.eq.s32.totalorder %s25, 0
      %p181 = por %p179, %p180
      %s182 = ssub.s32 %s26, %s38
      %s183 = ssub.s32 %s27, %s34
      %s184 = sor.u32 %s182, %s183
      %p185 = scmp.eq.s32.totalorder %s184, 0
      %s187 = sadd.s32 %s186, 1
      %s188 = scalar_select %p185, %s186, %s187
      %p191 = pneg %p185
      %p192 = scmp.eq.s32.totalorder %s19, 1
      %p193 = por %p191, %p192
      %p194 = scmp.ne.s32.totalorder %s186, %s189
      %p195 = scmp.eq.s32.totalorder %s19, 0
      %p196 = por %p194, %p195
      %p197 = scmp.ne.s32.totalorder %s186, %s189
      %p198 = scmp.eq.s32.totalorder %s24, 1
      %p199 = por %p197, %p198
      %p200 = scmp.ne.s32.totalorder %s189, %s190
      %p201 = scmp.eq.s32.totalorder %s24, 0
      %p202 = por %p200, %p201
      %p203 = scmp.ne.s32.totalorder %s189, %s190
      %p204 = scmp.eq.s32.totalorder %s25, 1
      %p205 = por %p203, %p204
      %p207 = scmp.ne.s32.totalorder %s190, %s206
      %p208 = scmp.eq.s32.totalorder %s25, 0
      %p209 = por %p207, %p208
      %p210 = scmp.le.s32.totalorder 1, %s19
      %p211 = scmp.lt.s32.totalorder %s19, 3
      %p212 = pnand %p210, %p211
      %p213 = pneg %p212
      // Predicated region
      $region9: #{tpu_custom_call.1} parent=5 // pred_check
        _
      $region10: #{tpu_custom_call.1} parent=5 // pred_check_branch
        %215 = sbr.rel (%p212) target = $region12
      $region11: #{tpu_custom_call.1} parent=5 // pred_region
        %s216 = ssub.s32 %s19, 1
        // Predicated region
        $region13: #{tpu_custom_call.1} parent=11 // pred_check
          %p217 = pneg %p80
        $region14: #{tpu_custom_call.1} parent=11 // pred_check_branch
          %219 = sbr.rel (%p217) target = $region16
        $region15: #{tpu_custom_call.1} parent=11 // pred_region
          %s221 = ssub.s32 384, 384
          %222 = vsyncadd [#allocation6], %s221
          %s223 = sshll.u32 [#allocation5], 4
          %s224 = int_to_ptr.vmem [resolvable:$true] %s223
          %229 = dma.hbm_to_vmem [thread:$0]  %s1, 384, %s224, [#allocation6], 128, 128, 8
        $region16: #{tpu_custom_call.1} parent=11 // pred_fallthru
          _
        // Predicated region
        $region17: #{tpu_custom_call.1} parent=11 // pred_check
          %p230 = pneg %p101
        $region18: #{tpu_custom_call.1} parent=11 // pred_check_branch
          %232 = sbr.rel (%p230) target = $region20
        $region19: #{tpu_custom_call.1} parent=11 // pred_region
          _
        $region20: #{tpu_custom_call.1} parent=11 // pred_fallthru
          _
        // Predicated region
        $region21: #{tpu_custom_call.1} parent=11 // pred_check
          %p233 = pneg %p174
        $region22: #{tpu_custom_call.1} parent=11 // pred_check_branch
          %235 = sbr.rel (%p233) target = $region24
        $region23: #{tpu_custom_call.1} parent=11 // pred_region
          %s237 = ssub.s32 2048, 2048
          %238 = vsyncadd [#allocation6], %s237
          %s239 = sshll.u32 [#allocation7], 4
          %s240 = int_to_ptr.vmem [resolvable:$true] %s239
          %245 = dma.hbm_to_vmem [thread:$0]  %s5, 2048, %s240, [#allocation6], 128, 128, 8
        $region24: #{tpu_custom_call.1} parent=11 // pred_fallthru
          _
      $region12: #{tpu_custom_call.1} parent=5 // pred_fallthru
        _
      %p246 = scmp.lt.s32.totalorder %s19, 2
      // Predicated region
      $region25: #{tpu_custom_call.1} parent=5 // pred_check
        %p247 = pneg %p246
      $region26: #{tpu_custom_call.1} parent=5 // pred_check_branch
        %249 = sbr.rel (%p247) target = $region28
      $region27: #{tpu_custom_call.1} parent=5 // pred_region
        // Predicated region
        $region29: #{tpu_custom_call.1} parent=27 // pred_check
          %p250 = pneg %p53
        $region30: #{tpu_custom_call.1} parent=27 // pred_check_branch
          %252 = sbr.rel (%p250) target = $region32
        $region31: #{tpu_custom_call.1} parent=27 // pred_region
          %s253 = sand.u32 %s43, 1
          %s254 = scalar_lea.sflag [#allocation3], %s253
          %s255 = sand.u32 %s43, 1
          %s256 = smul.addr %s255, 4
          %s257 = scalar_lea.vmem [#allocation2], %s256
          %s259 = ssub.s32 64, 64
          %260 = vsyncadd %s254, %s259
          %s261 = sadd.s32 %s27, %s26
          %s262 = smul.addr %s261, 64
          %s263 = scalar_lea.hbm %s0, %s262
          %s265 = sshll.u32 %s257, 4
          %s266 = int_to_ptr.vmem [resolvable:$true] %s265
          %268 = dma.hbm_to_vmem [thread:$0]  %s263, 64, %s266, %s254
        $region32: #{tpu_custom_call.1} parent=27 // pred_fallthru
          _
        // Predicated region
        $region33: #{tpu_custom_call.1} parent=27 // pred_check
          %p269 = pneg %p121
        $region34: #{tpu_custom_call.1} parent=27 // pred_check_branch
          %271 = sbr.rel (%p269) target = $region36
        $region35: #{tpu_custom_call.1} parent=27 // pred_region
          %p272 = scmp.lt.s32.totalorder %s26, 1
          %s273 = scalar_select %p272, %s26, 1
          %s274 = scalar_lea.vmem %s3, %s273
        $region36: #{tpu_custom_call.1} parent=27 // pred_fallthru
          _
        // Predicated region
        $region37: #{tpu_custom_call.1} parent=27 // pred_check
          %p275 = pneg %p147
        $region38: #{tpu_custom_call.1} parent=27 // pred_check_branch
          %277 = sbr.rel (%p275) target = $region40
        $region39: #{tpu_custom_call.1} parent=27 // pred_region
          %p278 = scmp.lt.s32.totalorder %s26, 1
          %s279 = scalar_select %p278, %s26, 1
          %s280 = scalar_lea.vmem %s4, %s279
        $region40: #{tpu_custom_call.1} parent=27 // pred_fallthru
          _
      $region28: #{tpu_custom_call.1} parent=5 // pred_fallthru
        _
      %p281 = scmp.le.s32.totalorder 1, %s19
      %p282 = scmp.lt.s32.totalorder %s19, 3
      %p283 = pnand %p281, %p282
      %p284 = pneg %p283
      // Predicated region
      $region41: #{tpu_custom_call.1} parent=5 // pred_check
        _
      $region42: #{tpu_custom_call.1} parent=5 // pred_check_branch
        %286 = sbr.rel (%p283) target = $region44
      $region43: #{tpu_custom_call.1} parent=5 // pred_region
        %s287 = ssub.s32 %s19, 1
        %s288 = sand.u32 %s46, 1
        %s289 = scalar_lea.sflag [#allocation3], %s288
        %s290 = sand.u32 %s46, 1
        %s291 = smul.addr %s290, 4
        %s292 = scalar_lea.vmem [#allocation2], %s291
        // Predicated region
        $region45: #{tpu_custom_call.1} parent=43 // pred_check
          %p293 = pneg %p59
        $region46: #{tpu_custom_call.1} parent=43 // pred_check_branch
          %295 = sbr.rel (%p293) target = $region48
        $region47: #{tpu_custom_call.1} parent=43 // pred_region
          %296 = dma.done %s289, 64
        $region48: #{tpu_custom_call.1} parent=43 // pred_fallthru
          _
        // Predicated region
        $region49: #{tpu_custom_call.1} parent=43 // pred_check
          %p297 = pneg %p80
        $region50: #{tpu_custom_call.1} parent=43 // pred_check_branch
          %299 = sbr.rel (%p297) target = $region52
        $region51: #{tpu_custom_call.1} parent=43 // pred_region
          %300 = dma.done [#allocation6], 384
        $region52: #{tpu_custom_call.1} parent=43 // pred_fallthru
          _
        // Predicated region
        $region53: #{tpu_custom_call.1} parent=43 // pred_check
          %p301 = pneg %p174
        $region54: #{tpu_custom_call.1} parent=43 // pred_check_branch
          %303 = sbr.rel (%p301) target = $region56
        $region55: #{tpu_custom_call.1} parent=43 // pred_region
          %304 = dma.done [#allocation6], 2048
        $region56: #{tpu_custom_call.1} parent=43 // pred_fallthru
          _
        %s305 = sand.u32 %s46, 1
        %s306 = scalar_lea.sflag [#allocation3], %s305
        %s307 = sand.u32 %s46, 1
        %s308 = smul.addr %s307, 4
        %s309 = scalar_lea.vmem [#allocation2], %s308
        %p310 = pneg %p59
        %p311 = pneg %p56
        %p312 = pneg %p80
        %p313 = pneg %p77
        %p314 = pneg %p101
        %p315 = pneg %p98
        %p316 = scmp.lt.s32.totalorder %s28, 1
        %s317 = scalar_select %p316, %s28, 1
        %s318 = scalar_lea.vmem %s3, %s317
        %p319 = pneg %p127
        %p320 = pneg %p124
        %p321 = scmp.lt.s32.totalorder %s28, 1
        %s322 = scalar_select %p321, %s28, 1
        %s323 = scalar_lea.vmem %s4, %s322
        %p324 = pneg %p153
        %p325 = pneg %p150
        %p326 = pneg %p174
        %p327 = pneg %p171
        %p328 = pneg %p202
        %p329 = pneg %p199
        %s330 = sand.u32 %s189, 1
        %s331 = scalar_lea.sflag [#allocation4], %s330
        %s332 = sand.u32 %s189, 1
        %s333 = smul.addr %s332, 4
        %s334 = scalar_lea.vmem [#allocation8], %s333
        %p335 = scmp.lt.s32.totalorder %s28, 1
        %s336 = scalar_select %p335, %s28, 1
        %s337 = scalar_lea.vmem %s3, %s336
        %p338 = scmp.lt.s32.totalorder %s28, 1
        %s339 = scalar_select %p338, %s28, 1
        %s340 = scalar_lea.vmem %s4, %s339
        %v341 = vld [vmem:[%s292] sm:$0xf]
        %v342 = vld [vmem:[#allocation5] sm:$0xff]
        %v343 = vld [vmem:[#allocation5 + $0x8] sm:$0xff]
        %v344 = vld [vmem:[#allocation5 + $0x10] sm:$0xff]
        %v345 = vld [vmem:[%s2] sm:$0x1]
        %v347 = vlaneseq
        %v348 = vshrl.u32 %v347, 7
        %v349 = vsub.s32 0, %v348
        %v350 = vrot.slane %v345, %v349
        %vm352 = vcmask 195584
        %v354 = vsel %vm352, %v341, 0
        %356 = vmatprep.subr.mxu0 0.0
        %357 = vmatpush1.msra.mxu0 %v342
        %358 = vmatprep.subr.mxu0 0.0
        %359 = vmatpush1.msra.mxu0 %v343
        %360 = vmatprep.subr.mxu0 0.0
        %361 = vmatpush1.msra.mxu0 %v344
        %362 = vmatprep.subr.mxu0 0.0
        %363 = vmatpush1.msra.mxu0 0.0
        %364 = vmatprep.subr.mxu0 0.0
        %365 = vmatpush1.msra.mxu0 0.0
        %366 = vmatprep.subr.mxu0 0.0
        %367 = vmatpush1.msra.mxu0 0.0
        %368 = vmatprep.subr.mxu0 0.0
        %369 = vmatpush1.msra.mxu0 0.0
        %370 = vmatprep.subr.mxu0 0.0
        %371 = vmatpush1.msra.mxu0 0.0
        %372 = vmatprep.subr.mxu0 0.0
        %373 = vmatpush1.msra.mxu0 0.0
        %374 = vmatprep.subr.mxu0 0.0
        %375 = vmatpush1.msra.mxu0 0.0
        %376 = vmatprep.subr.mxu0 0.0
        %377 = vmatpush1.msra.mxu0 0.0
        %378 = vmatprep.subr.mxu0 0.0
        %379 = vmatpush1.msra.mxu0 0.0
        %380 = vmatprep.subr.mxu0 0.0
        %381 = vmatpush1.msra.mxu0 0.0
        %382 = vmatprep.subr.mxu0 0.0
        %383 = vmatpush1.msra.mxu0 0.0
        %384 = vmatprep.subr.mxu0 0.0
        %385 = vmatpush1.msra.mxu0 0.0
        %386 = vmatprep.subr.mxu0 0.0
        %387 = vmatpush1.msra.mxu0 0.0
        %388 = vmatprep.subr.mxu0 0.0
        %389 = vmatpush1.msra.mxu0 0.0
        %390 = vmatprep.subr.mxu0 0.0
        %391 = vmatpush1.msra.mxu0 0.0
        %392 = vmatprep.subr.mxu0 0.0
        %393 = vmatpush1.msra.mxu0 0.0
        %394 = vmatprep.subr.mxu0 0.0
        %395 = vmatpush1.msra.mxu0 0.0
        %396 = vmatprep.subr.mxu0 0.0
        %397 = vmatpush1.msra.mxu0 0.0
        %398 = vmatprep.subr.mxu0 0.0
        %399 = vmatpush1.msra.mxu0 0.0
        %400 = vmatprep.subr.mxu0 0.0
        %401 = vmatpush1.msra.mxu0 0.0
        %402 = vmatprep.subr.mxu0 0.0
        %403 = vmatpush1.msra.mxu0 0.0
        %404 = vmatprep.subr.mxu0 0.0
        %405 = vmatpush1.msra.mxu0 0.0
        %406 = vmatprep.subr.mxu0 0.0
        %407 = vmatpush1.msra.mxu0 0.0
        %408 = vmatprep.subr.mxu0 0.0
        %409 = vmatpush1.msra.mxu0 0.0
        %410 = vmatprep.subr.mxu0 0.0
        %411 = vmatpush1.msra.mxu0 0.0
        %412 = vmatprep.subr.mxu0 0.0
        %413 = vmatpush1.msra.mxu0 0.0
        %414 = vmatprep.subr.mxu0 0.0
        %415 = vmatpush1.msra.mxu0 0.0
        %416 = vmatprep.subr.mxu0 0.0
        %417 = vmatpush1.msra.mxu0 0.0
        %418 = vmatprep.subr.mxu0 0.0
        %419 = vmatpush1.msra.mxu0 0.0
        %420 = vmatprep.mubr.f32.mxu0 0.0
        %421 = vmatmul.mubr.f32.gmra.mrb[0].mxu0 %v354
        %v422 = vpop.f32.mrb[0].mxu0
        %v423 = vadd.f32 %v350, %v422
        %v424 = vpop.f32.mrb[0].mxu0
        %425 = vdwg.mxu0
        %v426 = vmul.f32 %v423, 0.5
        %v427 = vmul.f32 %v423, 0.70710677
        %v428 = verf.f32.pop %v427
        %v429 = vadd.f32 %v428, 1.0
        %v430 = vmul.f32 %v426, %v429
        %v431 = vld [vmem:[#allocation7] sm:$0xff]
        %v432 = vld [vmem:[#allocation7 + $0x8] sm:$0xff]
        %v433 = vld [vmem:[#allocation7 + $0x10] sm:$0xff]
        %v434 = vld [vmem:[#allocation7 + $0x18] sm:$0xff]
        %v435 = vld [vmem:[#allocation7 + $0x20] sm:$0xff]
        %v436 = vld [vmem:[#allocation7 + $0x28] sm:$0xff]
        %v437 = vld [vmem:[#allocation7 + $0x30] sm:$0xff]
        %v438 = vld [vmem:[#allocation7 + $0x38] sm:$0xff]
        %v439 = vld [vmem:[#allocation7 + $0x40] sm:$0xff]
        %v440 = vld [vmem:[#allocation7 + $0x48] sm:$0xff]
        %v441 = vld [vmem:[#allocation7 + $0x50] sm:$0xff]
        %v442 = vld [vmem:[#allocation7 + $0x58] sm:$0xff]
        %v443 = vld [vmem:[#allocation7 + $0x60] sm:$0xff]
        %v444 = vld [vmem:[#allocation7 + $0x68] sm:$0xff]
        %v445 = vld [vmem:[#allocation7 + $0x70] sm:$0xff]
        %v446 = vld [vmem:[#allocation7 + $0x78] sm:$0xff]
        %447 = vmatprep.subr.mxu0 0.0
        %448 = vmatpush1.msra.mxu0 %v431
        %449 = vmatprep.subr.mxu0 0.0
        %450 = vmatpush1.msra.mxu0 %v432
        %451 = vmatprep.subr.mxu0 0.0
        %452 = vmatpush1.msra.mxu0 %v433
        %453 = vmatprep.subr.mxu0 0.0
        %454 = vmatpush1.msra.mxu0 %v434
        %455 = vmatprep.subr.mxu0 0.0
        %456 = vmatpush1.msra.mxu0 %v435
        %457 = vmatprep.subr.mxu0 0.0
        %458 = vmatpush1.msra.mxu0 %v436
        %459 = vmatprep.subr.mxu0 0.0
        %460 = vmatpush1.msra.mxu0 %v437
        %461 = vmatprep.subr.mxu0 0.0
        %462 = vmatpush1.msra.mxu0 %v438
        %463 = vmatprep.subr.mxu0 0.0
        %464 = vmatpush1.msra.mxu0 %v439
        %465 = vmatprep.subr.mxu0 0.0
        %466 = vmatpush1.msra.mxu0 %v440
        %467 = vmatprep.subr.mxu0 0.0
        %468 = vmatpush1.msra.mxu0 %v441
        %469 = vmatprep.subr.mxu0 0.0
        %470 = vmatpush1.msra.mxu0 %v442
        %471 = vmatprep.subr.mxu0 0.0
        %472 = vmatpush1.msra.mxu0 %v443
        %473 = vmatprep.subr.mxu0 0.0
        %474 = vmatpush1.msra.mxu0 %v444
        %475 = vmatprep.subr.mxu0 0.0
        %476 = vmatpush1.msra.mxu0 %v445
        %477 = vmatprep.subr.mxu0 0.0
        %478 = vmatpush1.msra.mxu0 %v446
        %479 = vmatprep.subr.mxu0 0.0
        %480 = vmatpush1.msra.mxu0 0.0
        %481 = vmatprep.subr.mxu0 0.0
        %482 = vmatpush1.msra.mxu0 0.0
        %483 = vmatprep.subr.mxu0 0.0
        %484 = vmatpush1.msra.mxu0 0.0
        %485 = vmatprep.subr.mxu0 0.0
        %486 = vmatpush1.msra.mxu0 0.0
        %487 = vmatprep.subr.mxu0 0.0
        %488 = vmatpush1.msra.mxu0 0.0
        %489 = vmatprep.subr.mxu0 0.0
        %490 = vmatpush1.msra.mxu0 0.0
        %491 = vmatprep.subr.mxu0 0.0
        %492 = vmatpush1.msra.mxu0 0.0
        %493 = vmatprep.subr.mxu0 0.0
        %494 = vmatpush1.msra.mxu0 0.0
        %495 = vmatprep.subr.mxu0 0.0
        %496 = vmatpush1.msra.mxu0 0.0
        %497 = vmatprep.subr.mxu0 0.0
        %498 = vmatpush1.msra.mxu0 0.0
        %499 = vmatprep.subr.mxu0 0.0
        %500 = vmatpush1.msra.mxu0 0.0
        %501 = vmatprep.subr.mxu0 0.0
        %502 = vmatpush1.msra.mxu0 0.0
        %503 = vmatprep.subr.mxu0 0.0
        %504 = vmatpush1.msra.mxu0 0.0
        %505 = vmatprep.subr.mxu0 0.0
        %506 = vmatpush1.msra.mxu0 0.0
        %507 = vmatprep.subr.mxu0 0.0
        %508 = vmatpush1.msra.mxu0 0.0
        %509 = vmatprep.subr.mxu0 0.0
        %510 = vmatpush1.msra.mxu0 0.0
        %511 = vmatprep.mubr.f32.mxu0 0.0
        %512 = vmatmul.mubr.f32.gmra.mrb[0].mxu0 %v430
        %v513 = vpop.f32.mrb[0].mxu0
        %v514 = vadd.f32 0.0, %v513
        %v515 = vpop.f32.mrb[0].mxu0
        %516 = vdwg.mxu0
        %v517 = vmul.f32 %v430, %v430
        %518 = vmatprep.subr.mxu0 0.0
        %519 = vmatpush1.msra.mxu0 %v431
        %520 = vmatprep.subr.mxu0 0.0
        %521 = vmatpush1.msra.mxu0 %v432
        %522 = vmatprep.subr.mxu0 0.0
        %523 = vmatpush1.msra.mxu0 %v433
        %524 = vmatprep.subr.mxu0 0.0
        %525 = vmatpush1.msra.mxu0 %v434
        %526 = vmatprep.subr.mxu0 0.0
        %527 = vmatpush1.msra.mxu0 %v435
        %528 = vmatprep.subr.mxu0 0.0
        %529 = vmatpush1.msra.mxu0 %v436
        %530 = vmatprep.subr.mxu0 0.0
        %531 = vmatpush1.msra.mxu0 %v437
        %532 = vmatprep.subr.mxu0 0.0
        %533 = vmatpush1.msra.mxu0 %v438
        %534 = vmatprep.subr.mxu0 0.0
        %535 = vmatpush1.msra.mxu0 %v439
        %536 = vmatprep.subr.mxu0 0.0
        %537 = vmatpush1.msra.mxu0 %v440
        %538 = vmatprep.subr.mxu0 0.0
        %539 = vmatpush1.msra.mxu0 %v441
        %540 = vmatprep.subr.mxu0 0.0
        %541 = vmatpush1.msra.mxu0 %v442
        %542 = vmatprep.subr.mxu0 0.0
        %543 = vmatpush1.msra.mxu0 %v443
        %544 = vmatprep.subr.mxu0 0.0
        %545 = vmatpush1.msra.mxu0 %v444
        %546 = vmatprep.subr.mxu0 0.0
        %547 = vmatpush1.msra.mxu0 %v445
        %548 = vmatprep.subr.mxu0 0.0
        %549 = vmatpush1.msra.mxu0 %v446
        %550 = vmatprep.subr.mxu0 0.0
        %551 = vmatpush1.msra.mxu0 0.0
        %552 = vmatprep.subr.mxu0 0.0
        %553 = vmatpush1.msra.mxu0 0.0
        %554 = vmatprep.subr.mxu0 0.0
        %555 = vmatpush1.msra.mxu0 0.0
        %556 = vmatprep.subr.mxu0 0.0
        %557 = vmatpush1.msra.mxu0 0.0
        %558 = vmatprep.subr.mxu0 0.0
        %559 = vmatpush1.msra.mxu0 0.0
        %560 = vmatprep.subr.mxu0 0.0
        %561 = vmatpush1.msra.mxu0 0.0
        %562 = vmatprep.subr.mxu0 0.0
        %563 = vmatpush1.msra.mxu0 0.0
        %564 = vmatprep.subr.mxu0 0.0
        %565 = vmatpush1.msra.mxu0 0.0
        %566 = vmatprep.subr.mxu0 0.0
        %567 = vmatpush1.msra.mxu0 0.0
        %568 = vmatprep.subr.mxu0 0.0
        %569 = vmatpush1.msra.mxu0 0.0
        %570 = vmatprep.subr.mxu0 0.0
        %571 = vmatpush1.msra.mxu0 0.0
        %572 = vmatprep.subr.mxu0 0.0
        %573 = vmatpush1.msra.mxu0 0.0
        %574 = vmatprep.subr.mxu0 0.0
        %575 = vmatpush1.msra.mxu0 0.0
        %576 = vmatprep.subr.mxu0 0.0
        %577 = vmatpush1.msra.mxu0 0.0
        %578 = vmatprep.subr.mxu0 0.0
        %579 = vmatpush1.msra.mxu0 0.0
        %580 = vmatprep.subr.mxu0 0.0
        %581 = vmatpush1.msra.mxu0 0.0
        %582 = vmatprep.mubr.f32.mxu0 0.0
        %583 = vmatmul.mubr.f32.gmra.mrb[0].mxu0 %v517
        %v584 = vpop.f32.mrb[0].mxu0
        %v585 = vadd.f32 0.0, %v584
        %v586 = vpop.f32.mrb[0].mxu0
        %587 = vdwg.mxu0
        %v588 = vmul.f32 %v514, %v514
        %v589 = vsub.f32 %v585, %v588
        %v590 = vmax.f32 %v589, 0.0
        %v591 = vsub.f32 %v430, %v514
        %v592 = vadd.f32 %v590, 1e-05
        %v593 = vrsqrt.pop %v592
        %v594 = vmul.f32 %v591, %v593
        %v595 = vld [vmem:[%s337] sm:$0x1]
        %v597 = vlaneseq
        %v598 = vshrl.u32 %v597, 7
        %v599 = vsub.s32 0, %v598
        %v600 = vrot.slane %v595, %v599
        %v602 = vmul.f32 %v594, %v600
        %v603 = vld [vmem:[%s340] sm:$0x1]
        %v605 = vlaneseq
        %v606 = vshrl.u32 %v605, 7
        %v607 = vsub.s32 0, %v606
        %v608 = vrot.slane %v603, %v607
        %v610 = vadd.f32 %v602, %v608
        %611 = vst [vmem:[%s334] sm:$0xf] %v610
        %s612 = sand.u32 %s189, 1
        %s613 = scalar_lea.sflag [#allocation4], %s612
        %s614 = sand.u32 %s189, 1
        %s615 = smul.addr %s614, 4
        %s616 = scalar_lea.vmem [#allocation8], %s615
        // Predicated region
        $region57: #{tpu_custom_call.1} parent=43 // pred_check
          %p617 = pneg %p199
        $region58: #{tpu_custom_call.1} parent=43 // pred_check_branch
          %619 = sbr.rel (%p617) target = $region60
        $region59: #{tpu_custom_call.1} parent=43 // pred_region
          %s621 = ssub.s32 64, 64
          %622 = vsyncadd %s613, %s621
          %s623 = sadd.s32 %s29, %s28
          %s624 = smul.addr %s623, 64
          %s625 = scalar_lea.hbm %s6, %s624
          %s627 = sshll.u32 %s616, 4
          %s628 = int_to_ptr.vmem [resolvable:$true] %s627
          %630 = dma.vmem_to_hbm [thread:$0]  %s628, 64, %s625, %s613
        $region60: #{tpu_custom_call.1} parent=43 // pred_fallthru
          _
      $region44: #{tpu_custom_call.1} parent=5 // pred_fallthru
        _
      %p631 = scmp.le.s32.totalorder 2, %s19
      // Predicated region
      $region61: #{tpu_custom_call.1} parent=5 // pred_check
        %p632 = pneg %p631
      $region62: #{tpu_custom_call.1} parent=5 // pred_check_branch
        %634 = sbr.rel (%p632) target = $region64
      $region63: #{tpu_custom_call.1} parent=5 // pred_region
        %s635 = ssub.s32 %s19, 2
        // Predicated region
        $region65: #{tpu_custom_call.1} parent=63 // pred_check
          %p636 = pneg %p205
        $region66: #{tpu_custom_call.1} parent=63 // pred_check_branch
          %638 = sbr.rel (%p636) target = $region68
        $region67: #{tpu_custom_call.1} parent=63 // pred_region
          %s639 = sand.u32 %s190, 1
          %s640 = scalar_lea.sflag [#allocation4], %s639
          %s641 = sand.u32 %s190, 1
          %s642 = smul.addr %s641, 4
          %s643 = scalar_lea.vmem [#allocation8], %s642
          %644 = dma.done %s640, 64
        $region68: #{tpu_custom_call.1} parent=63 // pred_fallthru
          _
      $region64: #{tpu_custom_call.1} parent=5 // pred_fallthru
        _
    $region6: #{tpu_custom_call.1} parent=1 // loop_footer
      %s23 = sadd.s32 1, %s19
    $region7: #{tpu_custom_call.1} parent=1 // loop_footer_branch
      %18 = sbr.rel target = $region3
    $region8: #{tpu_custom_call.1} parent=1 // loop_exit
      _
    %645 = vsyncpa [#allocation3], 1
    %s646 = scalar_lea.sflag [#allocation3], 1
    %647 = vsyncpa %s646, 1
    %648 = vsyncpa [#allocation6], 1
    %649 = vsyncpa [#allocation4], 1
    %s650 = scalar_lea.sflag [#allocation4], 1
    %651 = vsyncpa %s650, 1

</llo_original>
